<compile_context>
chip_gen: v7x
topology: tpu7x:2x2x1
jax: 0.10.0
libtpu: 0.0.40
codegen_flags: <defaults>
</compile_context>

<pallas_src>
import jax
import jax.numpy as jnp
from jax.experimental import pallas as pl
from jax.experimental.pallas import tpu as pltpu


def _fused_convblock_kernel(x_ref, w_ref, b_ref, o_ref):
    """One batch-block per grid step.

    x_ref: (Nb, Hp, Kp)     bf16; Hp = H+3 rounded up to 8, Kp = (W+3)*Cin -> mult. of 128
    w_ref: (Kp, 4*W*Cout)   bf16; 4 vertical-tap block-Toeplitz weights concatenated on lanes
    b_ref: (1, W*Cout)      f32;  fused bias pre-tiled over W
    o_ref: (Nb, H, W*Cout)  f32;  lane-dense fused output
    """
    Nb, Hp, Kp = x_ref.shape
    H, WC = o_ref.shape[1], o_ref.shape[2]

    # Single wide MXU matmul over all rows of the batch block (M = Nb*Hp).
    # Hp % 8 == 0 and Kp % 128 == 0 => the reshapes below are layout-free.
    x = x_ref[...].reshape(Nb * Hp, Kp)
    y = jnp.dot(x, w_ref[...], preferred_element_type=jnp.float32)
    y = y.reshape(Nb, Hp, 4 * WC)

    # Combine the 4 vertical taps with shifted adds (sublane shifts 0..3, lane
    # offsets are multiples of WC so the lane slices stay aligned).
    acc = y[:, 0:H, 0:WC]
    for a in range(1, 4):
        acc = acc + y[:, a:a + H, a * WC:(a + 1) * WC]

    # Bias + ReLU epilogue in f32; full-lane store.
    o_ref[...] = jnp.maximum(acc + b_ref[...], 0.0)


def _invariant_spec(block_shape, index_map):
    """Grid-invariant operand (constant index_map): single-buffer it when the
    installed jax supports BlockSpec.pipeline_mode; otherwise fall back (Pallas
    still skips the redundant per-step DMAs since the block index never moves)."""
    try:
        return pl.BlockSpec(block_shape, index_map,
                            pipeline_mode=pl.Buffered(buffer_count=1))
    except (TypeError, AttributeError):
        return pl.BlockSpec(block_shape, index_map)


def _build_fused_params(params, W):
    """Fuse the four branch convs into a single banded (block-Toeplitz) matmul
    weight (Kp, 4*W*Cout): one lane-block per vertical tap; the horizontal tap
    shift + channel contraction are folded into the K axis.

    Each k x k kernel is embedded at offset off_k = 1 - (k-1)//2 inside a shared
    4x4 tap grid matching a single (1, 2) 'same' padding of x (PyTorch even-k
    asymmetric padding).
    """
    d = params["b1"].shape[0]
    C = params["w1"].shape[1]
    Cout = 4 * d
    WC = W * Cout

    # Shared 4x4 tap grid, HWIO, branch-major output channels (= torch.cat order).
    wt = jnp.zeros((4, 4, C, Cout), jnp.float32)
    for idx, k in enumerate((1, 2, 3, 4)):
        off = 1 - (k - 1) // 2
        w_hwio = jnp.transpose(params[f"w{k}"].astype(jnp.float32), (2, 3, 1, 0))
        wt = wt.at[off:off + k, off:off + k, :, idx * d:(idx + 1) * d].set(w_hwio)

    # Banded weight: fold the horizontal tap shift into the contraction axis.
    q = jnp.arange(W + 3)[:, None]                      # padded column index
    j = jnp.arange(W)[None, :]                          # output column index
    b_tap = q - j                                       # horizontal tap
    valid = (b_tap >= 0) & (b_tap <= 3)
    m = wt[:, jnp.clip(b_tap, 0, 3)]                    # (4, W+3, W, C, Cout)
    m = jnp.where(valid[None, :, :, None, None], m, 0.0)
    m = jnp.transpose(m, (0, 1, 3, 2, 4)).reshape(4, (W + 3) * C, WC)

    # Zero-pad K to a lane-aligned multiple of 128 and concatenate the 4
    # vertical taps along the output axis -> one wide matmul in the kernel.
    K0 = (W + 3) * C
    Kp = ((K0 + 127) // 128) * 128
    m = jnp.pad(m, ((0, 0), (0, Kp - K0), (0, 0)))
    w_cat = jnp.transpose(m, (1, 0, 2)).reshape(Kp, 4 * WC).astype(jnp.bfloat16)

    bias = jnp.concatenate([params[f"b{k}"] for k in (1, 2, 3, 4)])
    bias = jnp.tile(bias.astype(jnp.float32).reshape(1, Cout), (1, W))
    return w_cat, bias, Kp


def conv_block_forward(params, x, input_dim):
    """Pallas implementation of ConvBlock.forward (NCHW in, NCHW out)."""
    if x.ndim == 1:
        x = x.reshape(1, input_dim, 4, 4)
    elif x.ndim == 2:
        x = x.reshape(-1, input_dim, 4, 4)
    N, C, H, W = x.shape
    d = params["b1"].shape[0]
    Cout = 4 * d
    WC = W * Cout

    w_fused, b_fused, Kp = _build_fused_params(params, W)

    # ---- batch blocking: even grid (fills both v7x TCs), <=64 images/step ----
    if N >= 2:
        grid_len = 2 * pl.cdiv(N, 2 * 64)
    else:
        grid_len = 1
    Nb = pl.cdiv(N, grid_len)
    N_pad = grid_len * Nb

    Hp = ((H + 3 + 7) // 8) * 8            # sublane-aligned padded height

    # Pad + NCHW->NHWC exactly once (shared k=4 'same' pad (1, 2)); flatten
    # (W+3, Cin) onto lanes, zero-pad K to Kp, pad batch to N_pad, cast bf16.
    x_nhwc = jnp.transpose(x.astype(jnp.float32), (0, 2, 3, 1))
    x_pad = jnp.pad(x_nhwc, ((0, N_pad - N), (1, Hp - H - 1), (1, 2), (0, 0)))
    x_flat = x_pad.reshape(N_pad, Hp, (W + 3) * C)
    x_flat = jnp.pad(x_flat, ((0, 0), (0, 0), (0, Kp - (W + 3) * C)))
    x_flat = x_flat.astype(jnp.bfloat16)

    # ---- honest VMEM budget: 2x(in+out) blocks + weights + compute scratch ----
    in_blk = Nb * Hp * Kp * 2                           # bf16 input block
    out_blk = Nb * H * WC * 4                           # f32 output block
    w_bytes = Kp * 4 * WC * 2 + WC * 4                  # resident weight + bias
    scratch = Nb * Hp * 4 * WC * 4 + in_blk + 2 * out_blk   # y (f32) + x value + acc
    vmem_limit = int(min(max(2 * (in_blk + out_blk) + 2 * w_bytes + 2 * scratch,
                             4 << 20), 48 << 20))

    out = pl.pallas_call(
        _fused_convblock_kernel,
        out_shape=jax.ShapeDtypeStruct((N_pad, H, WC), jnp.float32),
        grid=(grid_len,),
        in_specs=[
            pl.BlockSpec((Nb, Hp, Kp), lambda n: (n, 0, 0)),
            _invariant_spec((Kp, 4 * WC), lambda n: (0, 0)),
            _invariant_spec((1, WC), lambda n: (0, 0)),
        ],
        out_specs=pl.BlockSpec((Nb, H, WC), lambda n: (n, 0, 0)),
        compiler_params=pltpu.CompilerParams(
            dimension_semantics=("parallel",),          # v7x: split batch over 2 TCs
            vmem_limit_bytes=vmem_limit,
        ),
    )(x_flat, w_fused, b_fused)

    out = out[:N].reshape(N, H, W, Cout)                # undo lane-dense packing (free)
    return jnp.transpose(out, (0, 3, 1, 2))             # back to NCHW


def init_conv_block_params(key, input_dim, output_dim):
    """Deterministic PyTorch-like init (uniform +/- 1/sqrt(fan_in))."""
    d = output_dim // 4
    params = {}
    for k in (1, 2, 3, 4):
        key, kw, kb = jax.random.split(key, 3)
        fan_in = input_dim * k * k
        bound = 1.0 / jnp.sqrt(fan_in)
        params[f"w{k}"] = jax.random.uniform(
            kw, (d, input_dim, k, k), jnp.float32, -bound, bound)
        params[f"b{k}"] = jax.random.uniform(
            kb, (d,), jnp.float32, -bound, bound)
    return params


def _ref_conv_block(params, x):
    """Pure-JAX reference (lax.conv) for correctness check."""
    outs = []
    for k in (1, 2, 3, 4):
        lo = (k - 1) // 2
        hi = (k - 1) - lo
        y = jax.lax.conv_general_dilated(
            x, params[f"w{k}"], window_strides=(1, 1),
            padding=((lo, hi), (lo, hi)),
            dimension_numbers=("NCHW", "OIHW", "NCHW"))
        y = jnp.maximum(y + params[f"b{k}"].reshape(1, -1, 1, 1), 0.0)
        outs.append(y)
    return jnp.concatenate(outs, axis=1)


if __name__ == "__main__":
    input_dim = 4
    output_dim = 16
    N, H, W = 2, 16, 16

    key = jax.random.PRNGKey(0)
    key, kx = jax.random.split(key)
    x = jax.random.normal(kx, (N, input_dim, H, W), jnp.float32)
    params = init_conv_block_params(key, input_dim, output_dim)

    fwd = jax.jit(conv_block_forward, static_argnums=2)
    out = jax.block_until_ready(fwd(params, x, input_dim))

    ref = jax.block_until_ready(_ref_conv_block(params, x))
    assert out.shape == (N, output_dim, H, W), out.shape
    max_err = float(jnp.max(jnp.abs(out - ref)))
    # bf16 operands with f32 accumulation -> loosened tolerance vs f32 reference.
    assert max_err < 5e-2, f"max abs err {max_err}"

    print("KERNEL_OK")
</pallas_src>

<mosaic_0001>
module attributes {stable_mosaic.version = 11 : i64} {
  func.func @_fused_convblock_kernel(%arg0: i32, %arg1: memref<1x24x128xbf16, #tpu.memory_space<vmem>>, %arg2: memref<128x1024xbf16, #tpu.memory_space<vmem>>, %arg3: memref<1x256xf32, #tpu.memory_space<vmem>>, %arg4: memref<1x16x256xf32, #tpu.memory_space<vmem>>) attributes {dimension_semantics = [#tpu.dimension_semantics<parallel>], iteration_bounds = array<i64: 2>, scalar_prefetch = 0 : i64, scratch_operands = 0 : i64, tpu.core_type = #tpu.core_type<tc>, window_params = [{transform_indices = @transform_0, window_bounds = array<i64: 1, 24, 128>}, {pipeline_mode = #tpu.pipeline_mode<synchronous>, transform_indices = @transform_1, window_bounds = array<i64: 128, 1024>}, {pipeline_mode = #tpu.pipeline_mode<synchronous>, transform_indices = @transform_2, window_bounds = array<i64: 1, 256>}, {transform_indices = @transform_3, window_bounds = array<i64: 1, 16, 256>}]} {
    %c0 = arith.constant 0 : index
    %c0_0 = arith.constant 0 : index
    %c0_1 = arith.constant 0 : index
    %0 = vector.load %arg1[%c0, %c0_0, %c0_1] : memref<1x24x128xbf16, #tpu.memory_space<vmem>>, vector<1x24x128xbf16>
    %1 = vector.shape_cast %0 : vector<1x24x128xbf16> to vector<24x128xbf16>
    %c0_2 = arith.constant 0 : index
    %c0_3 = arith.constant 0 : index
    %2 = vector.load %arg2[%c0_2, %c0_3] : memref<128x1024xbf16, #tpu.memory_space<vmem>>, vector<128x1024xbf16>
    %cst = arith.constant dense<0.000000e+00> : vector<24x1024xf32>
    %3 = tpu.matmul %1, %2, %cst {dimension_numbers = #tpu.dot_dimension_numbers<[1], [0], [0], [1], [0, 0, 1, 1], [], []>} : vector<24x128xbf16>, vector<128x1024xbf16>, vector<24x1024xf32> -> vector<24x1024xf32>
    %4 = vector.shape_cast %3 : vector<24x1024xf32> to vector<1x24x1024xf32>
    %5 = vector.extract_strided_slice %4 {offsets = [0, 0, 0], sizes = [1, 16, 256], strides = [1, 1, 1]} : vector<1x24x1024xf32> to vector<1x16x256xf32>
    %6 = vector.extract_strided_slice %4 {offsets = [0, 1, 256], sizes = [1, 16, 256], strides = [1, 1, 1]} : vector<1x24x1024xf32> to vector<1x16x256xf32>
    %7 = arith.addf %5, %6 : vector<1x16x256xf32>
    %8 = vector.extract_strided_slice %4 {offsets = [0, 2, 512], sizes = [1, 16, 256], strides = [1, 1, 1]} : vector<1x24x1024xf32> to vector<1x16x256xf32>
    %9 = arith.addf %7, %8 : vector<1x16x256xf32>
    %10 = vector.extract_strided_slice %4 {offsets = [0, 3, 768], sizes = [1, 16, 256], strides = [1, 1, 1]} : vector<1x24x1024xf32> to vector<1x16x256xf32>
    %11 = arith.addf %9, %10 : vector<1x16x256xf32>
    %c0_4 = arith.constant 0 : index
    %c0_5 = arith.constant 0 : index
    %12 = vector.load %arg3[%c0_4, %c0_5] : memref<1x256xf32, #tpu.memory_space<vmem>>, vector<1x256xf32>
    %13 = vector.shape_cast %12 : vector<1x256xf32> to vector<1x1x256xf32>
    %14 = vector.broadcast %13 : vector<1x1x256xf32> to vector<1x16x256xf32>
    %15 = arith.addf %11, %14 : vector<1x16x256xf32>
    %cst_6 = arith.constant 0.000000e+00 : f32
    %16 = vector.broadcast %cst_6 : f32 to vector<1x16x256xf32>
    %17 = arith.maximumf %15, %16 : vector<1x16x256xf32>
    %c0_7 = arith.constant 0 : index
    %c0_8 = arith.constant 0 : index
    %c0_9 = arith.constant 0 : index
    %18 = vector.load %arg4[%c0_7, %c0_8, %c0_9] : memref<1x16x256xf32, #tpu.memory_space<vmem>>, vector<1x16x256xf32>
    tpu.vector_store %arg4[%c0_7, %c0_8, %c0_9], %17 {strides = array<i32>} : memref<1x16x256xf32, #tpu.memory_space<vmem>>, vector<1x16x256xf32>,
    return
  }
  func.func @transform_0(%arg0: i32) -> (i32, i32, i32) {
    %c0_i32 = arith.constant 0 : i32
    %c0_i32_0 = arith.constant 0 : i32
    %c0_i32_1 = arith.constant 0 : i32
    return %arg0, %c0_i32, %c0_i32_0 : i32, i32, i32
  }
  func.func @transform_1(%arg0: i32) -> (i32, i32) {
    %c0_i32 = arith.constant 0 : i32
    %c0_i32_0 = arith.constant 0 : i32
    %c0_i32_1 = arith.constant 0 : i32
    return %c0_i32, %c0_i32_0 : i32, i32
  }
  func.func @transform_2(%arg0: i32) -> (i32, i32) {
    %c0_i32 = arith.constant 0 : i32
    %c0_i32_0 = arith.constant 0 : i32
    %c0_i32_1 = arith.constant 0 : i32
    return %c0_i32, %c0_i32_0 : i32, i32
  }
  func.func @transform_3(%arg0: i32) -> (i32, i32, i32) {
    %c0_i32 = arith.constant 0 : i32
    %c0_i32_0 = arith.constant 0 : i32
    %c0_i32_1 = arith.constant 0 : i32
    return %arg0, %c0_i32, %c0_i32_0 : i32, i32, i32
  }
}

</mosaic_0001>

<llo_original>
// kernel: conv_block_forward.1
$region0: #{conv_block_forward.1}
  #allocation0 [shape = 'u32[]', space=smem, size = 0x4, offset = 0x4, fixed_abs, tag = 'smem constant byte address 0x4 - core index']
  #allocation1 [shape = 'u32[144,128]{1,0:T(1,128)}', space=vmem, size = 0x12000, scoped, tag = 'internal scratch']
  %s0 = inlined_call_operand.vmem [shape: bf16[2,24,128], index: 0, kind: input, shape index: {}]
  %s1 = inlined_call_operand.vmem [shape: bf16[128,1024], index: 1, kind: input, shape index: {}]
  %s2 = inlined_call_operand.vmem [shape: f32[1,256], index: 2, kind: input, shape index: {}]
  %s3 = inlined_call_operand.vmem [shape: f32[2,16,256], index: 3, kind: output, shape index: {}]
  %s4 = sld [smem:[#allocation0]]
  $region45: #{conv_block_forward.1} parent=0
    _
  %s6 = ssub.s32 1, %s4
  %s7 = scalar_select 0, %s6, %s4
  loop: start=0, step=1, limit=4
  $region2: #{conv_block_forward.1} parent=0 // loop_pre_header
    _
  $region3: #{conv_block_forward.1} parent=0 // loop_header
    %s9 = sphi 0, %s13
    %p10 = scmp.ge.s32.totalorder %s9, 4
    %s19 = sphi 0, %s21
    %s22 = sphi 0, %s19
    %s23 = sphi 0, %s22
    %s39 = sphi 0, %s23
    %s43 = sphi 0, %s43
    %s45 = sphi 0, %s43
    %s46 = sphi 0, %s45
    %s60 = sphi 0, %s46
    %s64 = sphi 0, %s64
    %s66 = sphi 0, %s64
    %s67 = sphi 0, %s66
    %s81 = sphi 0, %s67
    %s87 = sphi 0, %s89
    %s90 = sphi 0, %s87
    %s91 = sphi 0, %s90
    %s107 = sphi 0, %s91
  $region4: #{conv_block_forward.1} parent=0 // loop_header_branch
    %12 = sbr.rel (%p10) target = $region8
  $region5: #{conv_block_forward.1} parent=0 // loop_body
    %s14 = ssub.s32 %s9, 1
    %s15 = ssub.s32 %s9, 2
    %s16 = sadd.s32 %s9, 1
    %s17 = ssub.s32 %s9, %s16
    %p18 = scmp.eq.s32.totalorder %s17, 0
    %s20 = sadd.s32 %s19, 1
    %s21 = scalar_select %p18, %s19, %s20
    %p24 = pneg %p18
    %p25 = scmp.eq.s32.totalorder %s9, 1
    %p26 = por %p24, %p25
    %p27 = scmp.ne.s32.totalorder %s19, %s22
    %p28 = scmp.eq.s32.totalorder %s9, 0
    %p29 = por %p27, %p28
    %p30 = scmp.ne.s32.totalorder %s19, %s22
    %p31 = scmp.eq.s32.totalorder %s14, 1
    %p32 = por %p30, %p31
    %p33 = scmp.ne.s32.totalorder %s22, %s23
    %p34 = scmp.eq.s32.totalorder %s14, 0
    %p35 = por %p33, %p34
    %p36 = scmp.ne.s32.totalorder %s22, %s23
    %p37 = scmp.eq.s32.totalorder %s15, 1
    %p38 = por %p36, %p37
    %p40 = scmp.ne.s32.totalorder %s23, %s39
    %p41 = scmp.eq.s32.totalorder %s15, 0
    %p42 = por %p40, %p41
    %s44 = sadd.s32 %s43, 1
    %p47 = scmp.eq.s32.totalorder %s9, 1
    %p48 = scmp.ne.s32.totalorder %s43, %s45
    %p49 = scmp.eq.s32.totalorder %s9, 0
    %p50 = por %p48, %p49
    %p51 = scmp.ne.s32.totalorder %s43, %s45
    %p52 = scmp.eq.s32.totalorder %s14, 1
    %p53 = por %p51, %p52
    %p54 = scmp.ne.s32.totalorder %s45, %s46
    %p55 = scmp.eq.s32.totalorder %s14, 0
    %p56 = por %p54, %p55
    %p57 = scmp.ne.s32.totalorder %s45, %s46
    %p58 = scmp.eq.s32.totalorder %s15, 1
    %p59 = por %p57, %p58
    %p61 = scmp.ne.s32.totalorder %s46, %s60
    %p62 = scmp.eq.s32.totalorder %s15, 0
    %p63 = por %p61, %p62
    %s65 = sadd.s32 %s64, 1
    %p68 = scmp.eq.s32.totalorder %s9, 1
    %p69 = scmp.ne.s32.totalorder %s64, %s66
    %p70 = scmp.eq.s32.totalorder %s9, 0
    %p71 = por %p69, %p70
    %p72 = scmp.ne.s32.totalorder %s64, %s66
    %p73 = scmp.eq.s32.totalorder %s14, 1
    %p74 = por %p72, %p73
    %p75 = scmp.ne.s32.totalorder %s66, %s67
    %p76 = scmp.eq.s32.totalorder %s14, 0
    %p77 = por %p75, %p76
    %p78 = scmp.ne.s32.totalorder %s66, %s67
    %p79 = scmp.eq.s32.totalorder %s15, 1
    %p80 = por %p78, %p79
    %p82 = scmp.ne.s32.totalorder %s67, %s81
    %p83 = scmp.eq.s32.totalorder %s15, 0
    %p84 = por %p82, %p83
    %s85 = ssub.s32 %s9, %s16
    %p86 = scmp.eq.s32.totalorder %s85, 0
    %s88 = sadd.s32 %s87, 1
    %s89 = scalar_select %p86, %s87, %s88
    %p92 = pneg %p86
    %p93 = scmp.eq.s32.totalorder %s9, 1
    %p94 = por %p92, %p93
    %p95 = scmp.ne.s32.totalorder %s87, %s90
    %p96 = scmp.eq.s32.totalorder %s9, 0
    %p97 = por %p95, %p96
    %p98 = scmp.ne.s32.totalorder %s87, %s90
    %p99 = scmp.eq.s32.totalorder %s14, 1
    %p100 = por %p98, %p99
    %p101 = scmp.ne.s32.totalorder %s90, %s91
    %p102 = scmp.eq.s32.totalorder %s14, 0
    %p103 = por %p101, %p102
    %p104 = scmp.ne.s32.totalorder %s90, %s91
    %p105 = scmp.eq.s32.totalorder %s15, 1
    %p106 = por %p104, %p105
    %p108 = scmp.ne.s32.totalorder %s91, %s107
    %p109 = scmp.eq.s32.totalorder %s15, 0
    %p110 = por %p108, %p109
    %p111 = scmp.le.s32.totalorder 1, %s9
    %p112 = scmp.lt.s32.totalorder %s9, 3
    %p113 = pnand %p111, %p112
    %p114 = pneg %p113
    // Predicated region
    $region9: #{conv_block_forward.1} parent=5 // pred_check
      _
    $region10: #{conv_block_forward.1} parent=5 // pred_check_branch
      %116 = sbr.rel (%p113) target = $region12
    $region11: #{conv_block_forward.1} parent=5 // pred_region
      %s117 = ssub.s32 %s9, 1
      // Predicated region
      $region13: #{conv_block_forward.1} parent=11 // pred_check
        %p118 = pneg %p56
      $region14: #{conv_block_forward.1} parent=11 // pred_check_branch
        %120 = sbr.rel (%p118) target = $region16
      $region15: #{conv_block_forward.1} parent=11 // pred_region
        _
      $region16: #{conv_block_forward.1} parent=11 // pred_fallthru
        _
      // Predicated region
      $region17: #{conv_block_forward.1} parent=11 // pred_check
        %p121 = pneg %p77
      $region18: #{conv_block_forward.1} parent=11 // pred_check_branch
        %123 = sbr.rel (%p121) target = $region20
      $region19: #{conv_block_forward.1} parent=11 // pred_region
        _
      $region20: #{conv_block_forward.1} parent=11 // pred_fallthru
        _
    $region12: #{conv_block_forward.1} parent=5 // pred_fallthru
      _
    %p124 = scmp.lt.s32.totalorder %s9, 2
    // Predicated region
    $region21: #{conv_block_forward.1} parent=5 // pred_check
      %p125 = pneg %p124
    $region22: #{conv_block_forward.1} parent=5 // pred_check_branch
      %127 = sbr.rel (%p125) target = $region24
    $region23: #{conv_block_forward.1} parent=5 // pred_region
      // Predicated region
      $region25: #{conv_block_forward.1} parent=23 // pred_check
        %p128 = pneg %p29
      $region26: #{conv_block_forward.1} parent=23 // pred_check_branch
        %130 = sbr.rel (%p128) target = $region28
      $region27: #{conv_block_forward.1} parent=23 // pred_region
        %p131 = scmp.lt.s32.totalorder %s9, 1
        %s132 = scalar_select %p131, %s9, 1
        %s133 = smul.addr %s132, 3
        %s134 = smul.addr %s133, 4
        %s135 = scalar_lea.vmem %s0, %s134
      $region28: #{conv_block_forward.1} parent=23 // pred_fallthru
        _
    $region24: #{conv_block_forward.1} parent=5 // pred_fallthru
      _
    %p136 = scmp.le.s32.totalorder 1, %s9
    %p137 = scmp.lt.s32.totalorder %s9, 3
    %p138 = pnand %p136, %p137
    %p139 = pneg %p138
    // Predicated region
    $region29: #{conv_block_forward.1} parent=5 // pred_check
      _
    $region30: #{conv_block_forward.1} parent=5 // pred_check_branch
      %141 = sbr.rel (%p138) target = $region32
    $region31: #{conv_block_forward.1} parent=5 // pred_region
      %s142 = ssub.s32 %s9, 1
      %p143 = scmp.lt.s32.totalorder %s14, 1
      %s144 = scalar_select %p143, %s14, 1
      %s145 = smul.addr %s144, 3
      %s146 = smul.addr %s145, 4
      %s147 = scalar_lea.vmem %s0, %s146
      %p148 = pneg %p35
      %p149 = pneg %p32
      %p150 = pneg %p56
      %p151 = pneg %p53
      %p152 = pneg %p77
      %p153 = pneg %p74
      %p154 = pneg %p103
      %p155 = pneg %p100
      %p156 = scmp.lt.s32.totalorder %s14, 1
      %s157 = scalar_select %p156, %s14, 1
      %s158 = smul.addr %s157, 4
      %s159 = smul.addr %s158, 8
      %s160 = scalar_lea.vmem %s3, %s159
      %p161 = scmp.lt.s32.totalorder %s14, 1
      %s162 = scalar_select %p161, %s14, 1
      %s163 = smul.addr %s162, 3
      %s164 = smul.addr %s163, 4
      %s165 = scalar_lea.vmem %s0, %s164
      %p166 = scmp.lt.s32.totalorder %s14, 1
      %s167 = scalar_select %p166, %s14, 1
      %s168 = smul.addr %s167, 4
      %s169 = smul.addr %s168, 8
      %s170 = scalar_lea.vmem %s3, %s169
      %v172 = vld [vmem:[%s165] sm:$0xf]
      %v173 = vld [vmem:[%s165 + $0x4] sm:$0xf]
      %v174 = vld [vmem:[%s165 + $0x8] sm:$0xf]
      %v175 = vld [vmem:[%s1] sm:$0xff]
      %v176 = vld [vmem:[%s1 + $0x8] sm:$0xff]
      %v177 = vld [vmem:[%s1 + $0x10] sm:$0xff]
      %v178 = vld [vmem:[%s1 + $0x18] sm:$0xff]
      %v179 = vld [vmem:[%s1 + $0x20] sm:$0xff]
      %v180 = vld [vmem:[%s1 + $0x28] sm:$0xff]
      %v181 = vld [vmem:[%s1 + $0x30] sm:$0xff]
      %v182 = vld [vmem:[%s1 + $0x38] sm:$0xff]
      %v183 = vld [vmem:[%s1 + $0x40] sm:$0xff]
      %v184 = vld [vmem:[%s1 + $0x48] sm:$0xff]
      %v185 = vld [vmem:[%s1 + $0x50] sm:$0xff]
      %v186 = vld [vmem:[%s1 + $0x58] sm:$0xff]
      %v187 = vld [vmem:[%s1 + $0x60] sm:$0xff]
      %v188 = vld [vmem:[%s1 + $0x68] sm:$0xff]
      %v189 = vld [vmem:[%s1 + $0x70] sm:$0xff]
      %v190 = vld [vmem:[%s1 + $0x78] sm:$0xff]
      %v191 = vld [vmem:[%s1 + $0x80] sm:$0xff]
      %v192 = vld [vmem:[%s1 + $0x88] sm:$0xff]
      %v193 = vld [vmem:[%s1 + $0x90] sm:$0xff]
      %v194 = vld [vmem:[%s1 + $0x98] sm:$0xff]
      %v195 = vld [vmem:[%s1 + $0xa0] sm:$0xff]
      %v196 = vld [vmem:[%s1 + $0xa8] sm:$0xff]
      %v197 = vld [vmem:[%s1 + $0xb0] sm:$0xff]
      %v198 = vld [vmem:[%s1 + $0xb8] sm:$0xff]
      %v199 = vld [vmem:[%s1 + $0xc0] sm:$0xff]
      %v200 = vld [vmem:[%s1 + $0xc8] sm:$0xff]
      %v201 = vld [vmem:[%s1 + $0xd0] sm:$0xff]
      %v202 = vld [vmem:[%s1 + $0xd8] sm:$0xff]
      %v203 = vld [vmem:[%s1 + $0xe0] sm:$0xff]
      %v204 = vld [vmem:[%s1 + $0xe8] sm:$0xff]
      %v205 = vld [vmem:[%s1 + $0xf0] sm:$0xff]
      %v206 = vld [vmem:[%s1 + $0xf8] sm:$0xff]
      %v207 = vld [vmem:[%s1 + $0x100] sm:$0xff]
      %v208 = vld [vmem:[%s1 + $0x108] sm:$0xff]
      %v209 = vld [vmem:[%s1 + $0x110] sm:$0xff]
      %v210 = vld [vmem:[%s1 + $0x118] sm:$0xff]
      %v211 = vld [vmem:[%s1 + $0x120] sm:$0xff]
      %v212 = vld [vmem:[%s1 + $0x128] sm:$0xff]
      %v213 = vld [vmem:[%s1 + $0x130] sm:$0xff]
      %v214 = vld [vmem:[%s1 + $0x138] sm:$0xff]
      %v215 = vld [vmem:[%s1 + $0x140] sm:$0xff]
      %v216 = vld [vmem:[%s1 + $0x148] sm:$0xff]
      %v217 = vld [vmem:[%s1 + $0x150] sm:$0xff]
      %v218 = vld [vmem:[%s1 + $0x158] sm:$0xff]
      %v219 = vld [vmem:[%s1 + $0x160] sm:$0xff]
      %v220 = vld [vmem:[%s1 + $0x168] sm:$0xff]
      %v221 = vld [vmem:[%s1 + $0x170] sm:$0xff]
      %v222 = vld [vmem:[%s1 + $0x178] sm:$0xff]
      %v223 = vld [vmem:[%s1 + $0x180] sm:$0xff]
      %v224 = vld [vmem:[%s1 + $0x188] sm:$0xff]
      %v225 = vld [vmem:[%s1 + $0x190] sm:$0xff]
      %v226 = vld [vmem:[%s1 + $0x198] sm:$0xff]
      %v227 = vld [vmem:[%s1 + $0x1a0] sm:$0xff]
      %v228 = vld [vmem:[%s1 + $0x1a8] sm:$0xff]
      %v229 = vld [vmem:[%s1 + $0x1b0] sm:$0xff]
      %v230 = vld [vmem:[%s1 + $0x1b8] sm:$0xff]
      %v231 = vld [vmem:[%s1 + $0x1c0] sm:$0xff]
      %v232 = vld [vmem:[%s1 + $0x1c8] sm:$0xff]
      %v233 = vld [vmem:[%s1 + $0x1d0] sm:$0xff]
      %v234 = vld [vmem:[%s1 + $0x1d8] sm:$0xff]
      %v235 = vld [vmem:[%s1 + $0x1e0] sm:$0xff]
      %v236 = vld [vmem:[%s1 + $0x1e8] sm:$0xff]
      %v237 = vld [vmem:[%s1 + $0x1f0] sm:$0xff]
      %v238 = vld [vmem:[%s1 + $0x1f8] sm:$0xff]
      %v242 = vunpack.c.l.b16 %v172
      %v243 = vunpack.c.l.b16 %v173
      %v244 = vunpack.c.l.b16 %v174
      %v245 = vpack.c.b16 %v243, %v242
      %v246 = vpack.c.b16 %v244, %v244
      %v313 = vunpack.c.l.b16 %v175
      %v314 = vunpack.c.h.b16 %v175
      %v315 = vunpack.c.l.b16 %v176
      %v316 = vunpack.c.h.b16 %v176
      %v317 = vunpack.c.l.b16 %v177
      %v318 = vunpack.c.h.b16 %v177
      %v319 = vunpack.c.l.b16 %v178
      %v320 = vunpack.c.h.b16 %v178
      %v321 = vunpack.c.l.b16 %v179
      %v322 = vunpack.c.h.b16 %v179
      %v323 = vunpack.c.l.b16 %v180
      %v324 = vunpack.c.h.b16 %v180
      %v325 = vunpack.c.l.b16 %v181
      %v326 = vunpack.c.h.b16 %v181
      %v327 = vunpack.c.l.b16 %v182
      %v328 = vunpack.c.h.b16 %v182
      %v329 = vunpack.c.l.b16 %v183
      %v330 = vunpack.c.h.b16 %v183
      %v331 = vunpack.c.l.b16 %v184
      %v332 = vunpack.c.h.b16 %v184
      %v333 = vunpack.c.l.b16 %v185
      %v334 = vunpack.c.h.b16 %v185
      %v335 = vunpack.c.l.b16 %v186
      %v336 = vunpack.c.h.b16 %v186
      %v337 = vunpack.c.l.b16 %v187
      %v338 = vunpack.c.h.b16 %v187
      %v339 = vunpack.c.l.b16 %v188
      %v340 = vunpack.c.h.b16 %v188
      %v341 = vunpack.c.l.b16 %v189
      %v342 = vunpack.c.h.b16 %v189
      %v343 = vunpack.c.l.b16 %v190
      %v344 = vunpack.c.h.b16 %v190
      %v345 = vunpack.c.l.b16 %v191
      %v346 = vunpack.c.h.b16 %v191
      %v347 = vunpack.c.l.b16 %v192
      %v348 = vunpack.c.h.b16 %v192
      %v349 = vunpack.c.l.b16 %v193
      %v350 = vunpack.c.h.b16 %v193
      %v351 = vunpack.c.l.b16 %v194
      %v352 = vunpack.c.h.b16 %v194
      %v353 = vunpack.c.l.b16 %v195
      %v354 = vunpack.c.h.b16 %v195
      %v355 = vunpack.c.l.b16 %v196
      %v356 = vunpack.c.h.b16 %v196
      %v357 = vunpack.c.l.b16 %v197
      %v358 = vunpack.c.h.b16 %v197
      %v359 = vunpack.c.l.b16 %v198
      %v360 = vunpack.c.h.b16 %v198
      %v361 = vunpack.c.l.b16 %v199
      %v362 = vunpack.c.h.b16 %v199
      %v363 = vunpack.c.l.b16 %v200
      %v364 = vunpack.c.h.b16 %v200
      %v365 = vunpack.c.l.b16 %v201
      %v366 = vunpack.c.h.b16 %v201
      %v367 = vunpack.c.l.b16 %v202
      %v368 = vunpack.c.h.b16 %v202
      %v369 = vunpack.c.l.b16 %v203
      %v370 = vunpack.c.h.b16 %v203
      %v371 = vunpack.c.l.b16 %v204
      %v372 = vunpack.c.h.b16 %v204
      %v373 = vunpack.c.l.b16 %v205
      %v374 = vunpack.c.h.b16 %v205
      %v375 = vunpack.c.l.b16 %v206
      %v376 = vunpack.c.h.b16 %v206
      %v377 = vunpack.c.l.b16 %v207
      %v378 = vunpack.c.h.b16 %v207
      %v379 = vunpack.c.l.b16 %v208
      %v380 = vunpack.c.h.b16 %v208
      %v381 = vunpack.c.l.b16 %v209
      %v382 = vunpack.c.h.b16 %v209
      %v383 = vunpack.c.l.b16 %v210
      %v384 = vunpack.c.h.b16 %v210
      %v385 = vunpack.c.l.b16 %v211
      %v386 = vunpack.c.h.b16 %v211
      %v387 = vunpack.c.l.b16 %v212
      %v388 = vunpack.c.h.b16 %v212
      %v389 = vunpack.c.l.b16 %v213
      %v390 = vunpack.c.h.b16 %v213
      %v391 = vunpack.c.l.b16 %v214
      %v392 = vunpack.c.h.b16 %v214
      %v393 = vunpack.c.l.b16 %v215
      %v394 = vunpack.c.h.b16 %v215
      %v395 = vunpack.c.l.b16 %v216
      %v396 = vunpack.c.h.b16 %v216
      %v397 = vunpack.c.l.b16 %v217
      %v398 = vunpack.c.h.b16 %v217
      %v399 = vunpack.c.l.b16 %v218
      %v400 = vunpack.c.h.b16 %v218
      %v401 = vunpack.c.l.b16 %v219
      %v402 = vunpack.c.h.b16 %v219
      %v403 = vunpack.c.l.b16 %v220
      %v404 = vunpack.c.h.b16 %v220
      %v405 = vunpack.c.l.b16 %v221
      %v406 = vunpack.c.h.b16 %v221
      %v407 = vunpack.c.l.b16 %v222
      %v408 = vunpack.c.h.b16 %v222
      %v409 = vunpack.c.l.b16 %v223
      %v410 = vunpack.c.h.b16 %v223
      %v411 = vunpack.c.l.b16 %v224
      %v412 = vunpack.c.h.b16 %v224
      %v413 = vunpack.c.l.b16 %v225
      %v414 = vunpack.c.h.b16 %v225
      %v415 = vunpack.c.l.b16 %v226
      %v416 = vunpack.c.h.b16 %v226
      %v417 = vunpack.c.l.b16 %v227
      %v418 = vunpack.c.h.b16 %v227
      %v419 = vunpack.c.l.b16 %v228
      %v420 = vunpack.c.h.b16 %v228
      %v421 = vunpack.c.l.b16 %v229
      %v422 = vunpack.c.h.b16 %v229
      %v423 = vunpack.c.l.b16 %v230
      %v424 = vunpack.c.h.b16 %v230
      %v425 = vunpack.c.l.b16 %v231
      %v426 = vunpack.c.h.b16 %v231
      %v427 = vunpack.c.l.b16 %v232
      %v428 = vunpack.c.h.b16 %v232
      %v429 = vunpack.c.l.b16 %v233
      %v430 = vunpack.c.h.b16 %v233
      %v431 = vunpack.c.l.b16 %v234
      %v432 = vunpack.c.h.b16 %v234
      %v433 = vunpack.c.l.b16 %v235
      %v434 = vunpack.c.h.b16 %v235
      %v435 = vunpack.c.l.b16 %v236
      %v436 = vunpack.c.h.b16 %v236
      %v437 = vunpack.c.l.b16 %v237
      %v438 = vunpack.c.h.b16 %v237
      %v439 = vunpack.c.l.b16 %v238
      %v440 = vunpack.c.h.b16 %v238
      %v441 = vpack.c.b16 %v321, %v313
      %v442 = vpack.c.b16 %v322, %v314
      %v443 = vpack.c.b16 %v323, %v315
      %v444 = vpack.c.b16 %v324, %v316
      %v445 = vpack.c.b16 %v325, %v317
      %v446 = vpack.c.b16 %v326, %v318
      %v447 = vpack.c.b16 %v327, %v319
      %v448 = vpack.c.b16 %v328, %v320
      %v449 = vpack.c.b16 %v337, %v329
      %v450 = vpack.c.b16 %v338, %v330
      %v451 = vpack.c.b16 %v339, %v331
      %v452 = vpack.c.b16 %v340, %v332
      %v453 = vpack.c.b16 %v341, %v333
      %v454 = vpack.c.b16 %v342, %v334
      %v455 = vpack.c.b16 %v343, %v335
      %v456 = vpack.c.b16 %v344, %v336
      %v457 = vpack.c.b16 %v353, %v345
      %v458 = vpack.c.b16 %v354, %v346
      %v459 = vpack.c.b16 %v355, %v347
      %v460 = vpack.c.b16 %v356, %v348
      %v461 = vpack.c.b16 %v357, %v349
      %v462 = vpack.c.b16 %v358, %v350
      %v463 = vpack.c.b16 %v359, %v351
      %v464 = vpack.c.b16 %v360, %v352
      %v465 = vpack.c.b16 %v369, %v361
      %v466 = vpack.c.b16 %v370, %v362
      %v467 = vpack.c.b16 %v371, %v363
      %v468 = vpack.c.b16 %v372, %v364
      %v469 = vpack.c.b16 %v373, %v365
      %v470 = vpack.c.b16 %v374, %v366
      %v471 = vpack.c.b16 %v375, %v367
      %v472 = vpack.c.b16 %v376, %v368
      %v473 = vpack.c.b16 %v385, %v377
      %v474 = vpack.c.b16 %v386, %v378
      %v475 = vpack.c.b16 %v387, %v379
      %v476 = vpack.c.b16 %v388, %v380
      %v477 = vpack.c.b16 %v389, %v381
      %v478 = vpack.c.b16 %v390, %v382
      %v479 = vpack.c.b16 %v391, %v383
      %v480 = vpack.c.b16 %v392, %v384
      %v481 = vpack.c.b16 %v401, %v393
      %v482 = vpack.c.b16 %v402, %v394
      %v483 = vpack.c.b16 %v403, %v395
      %v484 = vpack.c.b16 %v404, %v396
      %v485 = vpack.c.b16 %v405, %v397
      %v486 = vpack.c.b16 %v406, %v398
      %v487 = vpack.c.b16 %v407, %v399
      %v488 = vpack.c.b16 %v408, %v400
      %v489 = vpack.c.b16 %v417, %v409
      %v490 = vpack.c.b16 %v418, %v410
      %v491 = vpack.c.b16 %v419, %v411
      %v492 = vpack.c.b16 %v420, %v412
      %v493 = vpack.c.b16 %v421, %v413
      %v494 = vpack.c.b16 %v422, %v414
      %v495 = vpack.c.b16 %v423, %v415
      %v496 = vpack.c.b16 %v424, %v416
      %v497 = vpack.c.b16 %v433, %v425
      %v498 = vpack.c.b16 %v434, %v426
      %v499 = vpack.c.b16 %v435, %v427
      %v500 = vpack.c.b16 %v436, %v428
      %v501 = vpack.c.b16 %v437, %v429
      %v502 = vpack.c.b16 %v438, %v430
      %v503 = vpack.c.b16 %v439, %v431
      %v504 = vpack.c.b16 %v440, %v432
      %569 = vmatprep.subr.bf16.mxu0 %v442
      %570 = vmatpush1.bf16.msra.mxu0 %v441
      %571 = vmatprep.subr.bf16.mxu0 %v450
      %572 = vmatpush1.bf16.msra.mxu0 %v449
      %573 = vmatprep.subr.bf16.mxu0 %v458
      %574 = vmatpush1.bf16.msra.mxu0 %v457
      %575 = vmatprep.subr.bf16.mxu0 %v466
      %576 = vmatpush1.bf16.msra.mxu0 %v465
      %577 = vmatprep.subr.bf16.mxu0 %v474
      %578 = vmatpush1.bf16.msra.mxu0 %v473
      %579 = vmatprep.subr.bf16.mxu0 %v482
      %580 = vmatpush1.bf16.msra.mxu0 %v481
      %581 = vmatprep.subr.bf16.mxu0 %v490
      %582 = vmatpush1.bf16.msra.mxu0 %v489
      %583 = vmatprep.subr.bf16.mxu0 %v498
      %584 = vmatpush1.bf16.msra.mxu0 %v497
      %585 = vmatprep.subr.bf16.mxu0 0
      %586 = vmatpush1.bf16.msra.mxu0 0
      %587 = vmatprep.subr.bf16.mxu0 0
      %588 = vmatpush1.bf16.msra.mxu0 0
      %589 = vmatprep.subr.bf16.mxu0 0
      %590 = vmatpush1.bf16.msra.mxu0 0
      %591 = vmatprep.subr.bf16.mxu0 0
      %592 = vmatpush1.bf16.msra.mxu0 0
      %593 = vmatprep.subr.bf16.mxu0 0
      %594 = vmatpush1.bf16.msra.mxu0 0
      %595 = vmatprep.subr.bf16.mxu0 0
      %596 = vmatpush1.bf16.msra.mxu0 0
      %597 = vmatprep.subr.bf16.mxu0 0
      %598 = vmatpush1.bf16.msra.mxu0 0
      %599 = vmatprep.subr.bf16.mxu0 0
      %600 = vmatpush1.bf16.msra.mxu0 0
      %601 = vmatprep.mubr.bf16.mxu0 0
      %602 = vmatmul.mubr.bf16.gmra.mrb[0].mxu0 %v245
      %v603 = vpop.f32.mrb[0].mxu0
      %v604 = vadd.f32 0.0, %v603
      %v605 = vpop.f32.mrb[0].mxu0
      %v606 = vadd.f32 0.0, %v605
      %v607 = vpop.f32.mrb[0].mxu0
      %v608 = vadd.f32 0.0, %v607
      %v609 = vpop.f32.mrb[0].mxu0
      %v610 = vadd.f32 0.0, %v609
      %611 = vmatprep.mubr.bf16.mxu0 0
      %612 = vmatmul.mubr.bf16.gmra.mrb[0].mxu0 %v246
      %v613 = vpop.f32.mrb[0].mxu0
      %v614 = vpop.f32.mrb[0].mxu0
      %v615 = vpop.f32.mrb[0].mxu0
      %v616 = vpop.f32.mrb[0].mxu0
      %617 = vdwg.mxu0
      %618 = vmatprep.subr.bf16.mxu0 %v444
      %619 = vmatpush1.bf16.msra.mxu0 %v443
      %620 = vmatprep.subr.bf16.mxu0 %v452
      %621 = vmatpush1.bf16.msra.mxu0 %v451
      %622 = vmatprep.subr.bf16.mxu0 %v460
      %623 = vmatpush1.bf16.msra.mxu0 %v459
      %624 = vmatprep.subr.bf16.mxu0 %v468
      %625 = vmatpush1.bf16.msra.mxu0 %v467
      %626 = vmatprep.subr.bf16.mxu0 %v476
      %627 = vmatpush1.bf16.msra.mxu0 %v475
      %628 = vmatprep.subr.bf16.mxu0 %v484
      %629 = vmatpush1.bf16.msra.mxu0 %v483
      %630 = vmatprep.subr.bf16.mxu0 %v492
      %631 = vmatpush1.bf16.msra.mxu0 %v491
      %632 = vmatprep.subr.bf16.mxu0 %v500
      %633 = vmatpush1.bf16.msra.mxu0 %v499
      %634 = vmatprep.subr.bf16.mxu0 0
      %635 = vmatpush1.bf16.msra.mxu0 0
      %636 = vmatprep.subr.bf16.mxu0 0
      %637 = vmatpush1.bf16.msra.mxu0 0
      %638 = vmatprep.subr.bf16.mxu0 0
      %639 = vmatpush1.bf16.msra.mxu0 0
      %640 = vmatprep.subr.bf16.mxu0 0
      %641 = vmatpush1.bf16.msra.mxu0 0
      %642 = vmatprep.subr.bf16.mxu0 0
      %643 = vmatpush1.bf16.msra.mxu0 0
      %644 = vmatprep.subr.bf16.mxu0 0
      %645 = vmatpush1.bf16.msra.mxu0 0
      %646 = vmatprep.subr.bf16.mxu0 0
      %647 = vmatpush1.bf16.msra.mxu0 0
      %648 = vmatprep.subr.bf16.mxu0 0
      %649 = vmatpush1.bf16.msra.mxu0 0
      %650 = vmatprep.mubr.bf16.mxu0 0
      %651 = vmatmul.mubr.bf16.gmra.mrb[0].mxu0 %v245
      %v652 = vpop.f32.mrb[0].mxu0
      %v653 = vadd.f32 0.0, %v652
      %v654 = vpop.f32.mrb[0].mxu0
      %v655 = vadd.f32 0.0, %v654
      %v656 = vpop.f32.mrb[0].mxu0
      %v657 = vadd.f32 0.0, %v656
      %v658 = vpop.f32.mrb[0].mxu0
      %v659 = vadd.f32 0.0, %v658
      %660 = vmatprep.mubr.bf16.mxu0 0
      %661 = vmatmul.mubr.bf16.gmra.mrb[0].mxu0 %v246
      %v662 = vpop.f32.mrb[0].mxu0
      %v663 = vadd.f32 0.0, %v662
      %v664 = vpop.f32.mrb[0].mxu0
      %v665 = vadd.f32 0.0, %v664
      %v666 = vpop.f32.mrb[0].mxu0
      %v667 = vpop.f32.mrb[0].mxu0
      %668 = vdwg.mxu0
      %669 = vmatprep.subr.bf16.mxu0 %v446
      %670 = vmatpush1.bf16.msra.mxu0 %v445
      %671 = vmatprep.subr.bf16.mxu0 %v454
      %672 = vmatpush1.bf16.msra.mxu0 %v453
      %673 = vmatprep.subr.bf16.mxu0 %v462
      %674 = vmatpush1.bf16.msra.mxu0 %v461
      %675 = vmatprep.subr.bf16.mxu0 %v470
      %676 = vmatpush1.bf16.msra.mxu0 %v469
      %677 = vmatprep.subr.bf16.mxu0 %v478
      %678 = vmatpush1.bf16.msra.mxu0 %v477
      %679 = vmatprep.subr.bf16.mxu0 %v486
      %680 = vmatpush1.bf16.msra.mxu0 %v485
      %681 = vmatprep.subr.bf16.mxu0 %v494
      %682 = vmatpush1.bf16.msra.mxu0 %v493
      %683 = vmatprep.subr.bf16.mxu0 %v502
      %684 = vmatpush1.bf16.msra.mxu0 %v501
      %685 = vmatprep.subr.bf16.mxu0 0
      %686 = vmatpush1.bf16.msra.mxu0 0
      %687 = vmatprep.subr.bf16.mxu0 0
      %688 = vmatpush1.bf16.msra.mxu0 0
      %689 = vmatprep.subr.bf16.mxu0 0
      %690 = vmatpush1.bf16.msra.mxu0 0
      %691 = vmatprep.subr.bf16.mxu0 0
      %692 = vmatpush1.bf16.msra.mxu0 0
      %693 = vmatprep.subr.bf16.mxu0 0
      %694 = vmatpush1.bf16.msra.mxu0 0
      %695 = vmatprep.subr.bf16.mxu0 0
      %696 = vmatpush1.bf16.msra.mxu0 0
      %697 = vmatprep.subr.bf16.mxu0 0
      %698 = vmatpush1.bf16.msra.mxu0 0
      %699 = vmatprep.subr.bf16.mxu0 0
      %700 = vmatpush1.bf16.msra.mxu0 0
      %701 = vmatprep.mubr.bf16.mxu0 0
      %702 = vmatmul.mubr.bf16.gmra.mrb[0].mxu0 %v245
      %v703 = vpop.f32.mrb[0].mxu0
      %v704 = vadd.f32 0.0, %v703
      %v705 = vpop.f32.mrb[0].mxu0
      %v706 = vadd.f32 0.0, %v705
      %v707 = vpop.f32.mrb[0].mxu0
      %v708 = vadd.f32 0.0, %v707
      %v709 = vpop.f32.mrb[0].mxu0
      %v710 = vadd.f32 0.0, %v709
      %711 = vmatprep.mubr.bf16.mxu0 0
      %712 = vmatmul.mubr.bf16.gmra.mrb[0].mxu0 %v246
      %v713 = vpop.f32.mrb[0].mxu0
      %v714 = vadd.f32 0.0, %v713
      %v715 = vpop.f32.mrb[0].mxu0
      %v716 = vadd.f32 0.0, %v715
      %v717 = vpop.f32.mrb[0].mxu0
      %v718 = vpop.f32.mrb[0].mxu0
      %719 = vdwg.mxu0
      %720 = vmatprep.subr.bf16.mxu0 %v448
      %721 = vmatpush1.bf16.msra.mxu0 %v447
      %722 = vmatprep.subr.bf16.mxu0 %v456
      %723 = vmatpush1.bf16.msra.mxu0 %v455
      %724 = vmatprep.subr.bf16.mxu0 %v464
      %725 = vmatpush1.bf16.msra.mxu0 %v463
      %726 = vmatprep.subr.bf16.mxu0 %v472
      %727 = vmatpush1.bf16.msra.mxu0 %v471
      %728 = vmatprep.subr.bf16.mxu0 %v480
      %729 = vmatpush1.bf16.msra.mxu0 %v479
      %730 = vmatprep.subr.bf16.mxu0 %v488
      %731 = vmatpush1.bf16.msra.mxu0 %v487
      %732 = vmatprep.subr.bf16.mxu0 %v496
      %733 = vmatpush1.bf16.msra.mxu0 %v495
      %734 = vmatprep.subr.bf16.mxu0 %v504
      %735 = vmatpush1.bf16.msra.mxu0 %v503
      %736 = vmatprep.subr.bf16.mxu0 0
      %737 = vmatpush1.bf16.msra.mxu0 0
      %738 = vmatprep.subr.bf16.mxu0 0
      %739 = vmatpush1.bf16.msra.mxu0 0
      %740 = vmatprep.subr.bf16.mxu0 0
      %741 = vmatpush1.bf16.msra.mxu0 0
      %742 = vmatprep.subr.bf16.mxu0 0
      %743 = vmatpush1.bf16.msra.mxu0 0
      %744 = vmatprep.subr.bf16.mxu0 0
      %745 = vmatpush1.bf16.msra.mxu0 0
      %746 = vmatprep.subr.bf16.mxu0 0
      %747 = vmatpush1.bf16.msra.mxu0 0
      %748 = vmatprep.subr.bf16.mxu0 0
      %749 = vmatpush1.bf16.msra.mxu0 0
      %750 = vmatprep.subr.bf16.mxu0 0
      %751 = vmatpush1.bf16.msra.mxu0 0
      %752 = vmatprep.mubr.bf16.mxu0 0
      %753 = vmatmul.mubr.bf16.gmra.mrb[0].mxu0 %v245
      %v754 = vpop.f32.mrb[0].mxu0
      %v755 = vadd.f32 0.0, %v754
      %v756 = vpop.f32.mrb[0].mxu0
      %v757 = vadd.f32 0.0, %v756
      %v758 = vpop.f32.mrb[0].mxu0
      %v759 = vadd.f32 0.0, %v758
      %v760 = vpop.f32.mrb[0].mxu0
      %v761 = vadd.f32 0.0, %v760
      %762 = vmatprep.mubr.bf16.mxu0 0
      %763 = vmatmul.mubr.bf16.gmra.mrb[0].mxu0 %v246
      %v764 = vpop.f32.mrb[0].mxu0
      %v765 = vadd.f32 0.0, %v764
      %v766 = vpop.f32.mrb[0].mxu0
      %v767 = vadd.f32 0.0, %v766
      %v768 = vpop.f32.mrb[0].mxu0
      %v769 = vpop.f32.mrb[0].mxu0
      %770 = vdwg.mxu0
      %vm777 = vcmask 1046528
      %v778 = vrot.slane %v653, 1
      %v779 = vrot.slane %v657, 1
      %v780 = vsel %vm777, %v778, %v779
      %v781 = vrot.slane %v655, 1
      %v782 = vrot.slane %v659, 1
      %v783 = vsel %vm777, %v781, %v782
      %v784 = vrot.slane %v663, 1
      %v785 = vsel %vm777, %v779, %v784
      %v786 = vrot.slane %v665, 1
      %v787 = vsel %vm777, %v782, %v786
      %v792 = vadd.f32 %v604, %v780
      %v793 = vadd.f32 %v606, %v783
      %v794 = vadd.f32 %v608, %v785
      %v795 = vadd.f32 %v610, %v787
      %vm802 = vcmask 1045504
      %v803 = vrot.slane %v704, 2
      %v804 = vrot.slane %v708, 2
      %v805 = vsel %vm802, %v803, %v804
      %v806 = vrot.slane %v706, 2
      %v807 = vrot.slane %v710, 2
      %v808 = vsel %vm802, %v806, %v807
      %v809 = vrot.slane %v714, 2
      %v810 = vsel %vm802, %v804, %v809
      %v811 = vrot.slane %v716, 2
      %v812 = vsel %vm802, %v807, %v811
      %v817 = vadd.f32 %v792, %v805
      %v818 = vadd.f32 %v793, %v808
      %v819 = vadd.f32 %v794, %v810
      %v820 = vadd.f32 %v795, %v812
      %vm827 = vcmask 1044480
      %v828 = vrot.slane %v755, 3
      %v829 = vrot.slane %v759, 3
      %v830 = vsel %vm827, %v828, %v829
      %v831 = vrot.slane %v757, 3
      %v832 = vrot.slane %v761, 3
      %v833 = vsel %vm827, %v831, %v832
      %v834 = vrot.slane %v765, 3
      %v835 = vsel %vm827, %v829, %v834
      %v836 = vrot.slane %v767, 3
      %v837 = vsel %vm827, %v832, %v836
      %v842 = vadd.f32 %v817, %v830
      %v843 = vadd.f32 %v818, %v833
      %v844 = vadd.f32 %v819, %v835
      %v845 = vadd.f32 %v820, %v837
      %v846 = vld [vmem:[%s2] sm:$0x3]
      %v848 = vlaneseq
      %v849 = vshrl.u32 %v848, 7
      %v850 = vsub.s32 0, %v849
      %v851 = vrot.slane %v846, %v850
      %v852 = vlaneseq
      %v853 = vshrl.u32 %v852, 7
      %v854 = vsub.s32 1, %v853
      %v855 = vrot.slane %v846, %v854
      %v858 = vadd.f32 %v842, %v851
      %v859 = vadd.f32 %v843, %v855
      %v860 = vadd.f32 %v844, %v851
      %v861 = vadd.f32 %v845, %v855
      %v862 = vmax.f32 %v858, 0.0
      %v863 = vmax.f32 %v859, 0.0
      %v864 = vmax.f32 %v860, 0.0
      %v865 = vmax.f32 %v861, 0.0
      %866 = vst [vmem:[%s170] sm:$0xff] %v862
      %867 = vst [vmem:[%s170 + $0x8] sm:$0xff] %v863
      %868 = vst [vmem:[%s170 + $0x10] sm:$0xff] %v864
      %869 = vst [vmem:[%s170 + $0x18] sm:$0xff] %v865
      %p870 = scmp.lt.s32.totalorder %s14, 1
      %s871 = scalar_select %p870, %s14, 1
      %s872 = smul.addr %s871, 4
      %s873 = smul.addr %s872, 8
      %s874 = scalar_lea.vmem %s3, %s873
      // Predicated region
      $region33: #{conv_block_forward.1} parent=31 // pred_check
        %p875 = pneg %p100
      $region34: #{conv_block_forward.1} parent=31 // pred_check_branch
        %877 = sbr.rel (%p875) target = $region36
      $region35: #{conv_block_forward.1} parent=31 // pred_region
        _
      $region36: #{conv_block_forward.1} parent=31 // pred_fallthru
        _
    $region32: #{conv_block_forward.1} parent=5 // pred_fallthru
      _
    %p878 = scmp.le.s32.totalorder 2, %s9
    // Predicated region
    $region37: #{conv_block_forward.1} parent=5 // pred_check
      %p879 = pneg %p878
    $region38: #{conv_block_forward.1} parent=5 // pred_check_branch
      %881 = sbr.rel (%p879) target = $region40
    $region39: #{conv_block_forward.1} parent=5 // pred_region
      %s882 = ssub.s32 %s9, 2
      // Predicated region
      $region41: #{conv_block_forward.1} parent=39 // pred_check
        %p883 = pneg %p106
      $region42: #{conv_block_forward.1} parent=39 // pred_check_branch
        %885 = sbr.rel (%p883) target = $region44
      $region43: #{conv_block_forward.1} parent=39 // pred_region
        %p886 = scmp.lt.s32.totalorder %s15, 1
        %s887 = scalar_select %p886, %s15, 1
        %s888 = smul.addr %s887, 4
        %s889 = smul.addr %s888, 8
        %s890 = scalar_lea.vmem %s3, %s889
      $region44: #{conv_block_forward.1} parent=39 // pred_fallthru
        _
    $region40: #{conv_block_forward.1} parent=5 // pred_fallthru
      _
  $region6: #{conv_block_forward.1} parent=0 // loop_footer
    %s13 = sadd.s32 1, %s9
  $region7: #{conv_block_forward.1} parent=0 // loop_footer_branch
    %8 = sbr.rel target = $region3
  $region8: #{conv_block_forward.1} parent=0 // loop_exit
    _

</llo_original>
